<compile_context>
chip_gen: v6e
topology: v6e:2x2x1
jax: 0.10.0
libtpu: 0.0.40
codegen_flags: <defaults>
</compile_context>

<pallas_src>
import math
import jax
import jax.numpy as jnp
from jax.experimental import pallas as pl
from jax.experimental.pallas import tpu as pltpu


D_IN = 129
D_OUT = 120
D_IN_MAIN = 128   # first 128 input features go through the MXU
N_PAD = 128       # 120 -> 128 lane-dense output stores


def _round_up(n, m):
    return ((n + m - 1) // m) * m


def _mlp_kernel(x_ref,
                w1m_ref, w1l_ref, b1_ref,
                w2_ref, b2_ref,
                w3_ref, b3_ref,
                w4_ref, b4_ref,
                o_ref):
    # Load biases once per grid step (no repeated broadcast materialization).
    b1 = b1_ref[...]
    b2 = b2_ref[...]
    b3 = b3_ref[...]
    b4 = b4_ref[...]

    x = x_ref[...]                                   # (tb, 129) f32
    mm_dtype = w1m_ref.dtype                         # bf16 (or f32 fallback)
    x_main = x[:, :D_IN_MAIN].astype(mm_dtype)       # (tb, 128)
    x_last = x[:, D_IN_MAIN:D_IN]                    # (tb, 1) f32

    # Layer 1: 128-wide MXU matmul + rank-1 VPU update for feature 128.
    h = jnp.dot(x_main, w1m_ref[...], preferred_element_type=jnp.float32)
    h = jnp.maximum(h + x_last * w1l_ref[...] + b1, 0.0)

    # Layers 2-4: bf16 operands, f32 accumulation, ReLU between.
    h = jnp.maximum(
        jnp.dot(h.astype(mm_dtype), w2_ref[...],
                preferred_element_type=jnp.float32) + b2, 0.0)
    h = jnp.maximum(
        jnp.dot(h.astype(mm_dtype), w3_ref[...],
                preferred_element_type=jnp.float32) + b3, 0.0)
    y = jnp.dot(h.astype(mm_dtype), w4_ref[...],
                preferred_element_type=jnp.float32) + b4
    o_ref[...] = y.astype(o_ref.dtype)


def prepare_params(params, *, matmul_dtype=jnp.bfloat16):
    """One-time conversion of PyTorch-style params to the kernel layout.

    * Weights are stored (in, out) so y = x @ W + b == PyTorch x @ W.T + b.
    * w1 split: rows [0:128] cast for the MXU, row 128 kept f32 and applied as
      a rank-1 VPU update (removes the per-call 129 -> 256 pad of x).
    * w4/b4 zero-padded 120 -> 128 lanes (exact, sliced off by the wrapper).
    * matmul weights cast to `matmul_dtype` (bf16 by default); biases and the
      rank-1 column stay f32; accumulation is always f32.
    """
    (w1, b1), (w2, b2), (w3, b3), (w4, b4) = params
    return dict(
        w1m=w1[:D_IN_MAIN, :].astype(matmul_dtype),
        w1l=w1[D_IN_MAIN:, :].astype(jnp.float32),
        b1=b1.astype(jnp.float32),
        w2=w2.astype(matmul_dtype), b2=b2.astype(jnp.float32),
        w3=w3.astype(matmul_dtype), b3=b3.astype(jnp.float32),
        w4=jnp.pad(w4, ((0, 0), (0, N_PAD - D_OUT))).astype(matmul_dtype),
        b4=jnp.pad(b4, ((0, 0), (0, N_PAD - D_OUT))).astype(jnp.float32),
    )


def refinement_model_forward(x, prep, *, tile_b=512):
    """x: (B, 129) f32, prep: prepare_params(...).  Returns (B, 120) f32."""
    B, Din = x.shape
    assert Din == D_IN, Din

    # ---- batch tiling: balanced multiple-of-8 tiles, >=2 steps for B > 256
    # (so v7x can shard the "parallel" axis over its 2 TensorCores without one
    # core getting a mostly-padded tile). ----
    n_steps = max(1, pl.cdiv(B, tile_b))
    if B > 256 and n_steps < 2:
        n_steps = 2
    tb = _round_up(pl.cdiv(B, n_steps), 8)
    n_steps = pl.cdiv(B, tb)
    B_pad = n_steps * tb

    x_p = x if B_pad == B else jnp.pad(x, ((0, B_pad - B), (0, 0)))

    def const_spec(arr):
        # Whole weight/bias resident in VMEM at every grid step.
        return pl.BlockSpec(arr.shape, lambda i: (0, 0))

    out = pl.pallas_call(
        _mlp_kernel,
        out_shape=jax.ShapeDtypeStruct((B_pad, N_PAD), jnp.float32),
        grid_spec=pltpu.PrefetchScalarGridSpec(
            num_scalar_prefetch=0,
            grid=(n_steps,),
            in_specs=[
                # x tile: last dim 129 == full array dim (legal BlockSpec).
                pl.BlockSpec((tb, D_IN), lambda i: (i, 0)),
                const_spec(prep["w1m"]), const_spec(prep["w1l"]),
                const_spec(prep["b1"]),
                const_spec(prep["w2"]), const_spec(prep["b2"]),
                const_spec(prep["w3"]), const_spec(prep["b3"]),
                const_spec(prep["w4"]), const_spec(prep["b4"]),
            ],
            out_specs=pl.BlockSpec((tb, N_PAD), lambda i: (i, 0)),
        ),
        compiler_params=pltpu.CompilerParams(
            dimension_semantics=("parallel",),
        ),
    )(x_p,
      prep["w1m"], prep["w1l"], prep["b1"],
      prep["w2"], prep["b2"],
      prep["w3"], prep["b3"],
      prep["w4"], prep["b4"])

    return out[:B, :D_OUT]


def init_params(key):
    """Deterministic init matching PyTorch nn.Linear default scale.

    Weights stored as (in, out); biases as (1, out) for 2-D TPU layout.
    """
    dims = [(129, 256), (256, 512), (512, 256), (256, 120)]
    params = []
    for (fan_in, fan_out) in dims:
        key, kw, kb = jax.random.split(key, 3)
        limit = 1.0 / math.sqrt(fan_in)
        w = jax.random.uniform(kw, (fan_in, fan_out), jnp.float32,
                               minval=-limit, maxval=limit)
        b = jax.random.uniform(kb, (1, fan_out), jnp.float32,
                               minval=-limit, maxval=limit)
        params.append((w, b))
    return params


def reference_forward(x, params):
    h = x
    for i, (w, b) in enumerate(params):
        h = h @ w + b
        if i < len(params) - 1:
            h = jnp.maximum(h, 0.0)
    return h


if __name__ == "__main__":
    key = jax.random.PRNGKey(0)
    key, kx1, kx2 = jax.random.split(key, 3)
    params = init_params(key)

    # 1) Exactness check (f32 matmul path), small non-multiple-of-8 batch.
    prep_f32 = prepare_params(params, matmul_dtype=jnp.float32)
    B1 = 10
    x1 = jax.random.normal(kx1, (B1, D_IN), jnp.float32)
    out1 = jax.block_until_ready(refinement_model_forward(x1, prep_f32))
    ref1 = reference_forward(x1, params)
    assert out1.shape == (B1, D_OUT), out1.shape
    assert jnp.allclose(out1, ref1, atol=1e-4, rtol=1e-4), \
        f"f32 max abs diff {jnp.max(jnp.abs(out1 - ref1))}"

    # 2) Default bf16 MXU path, multi-tile grid with balanced tiles
    #    (bf16 operands diverge slightly from the f32 PyTorch reference).
    prep_bf16 = prepare_params(params)
    B2 = 272
    x2 = jax.random.normal(kx2, (B2, D_IN), jnp.float32)
    out2 = jax.block_until_ready(
        refinement_model_forward(x2, prep_bf16, tile_b=128))
    ref2 = reference_forward(x2, params)
    assert out2.shape == (B2, D_OUT), out2.shape
    assert jnp.allclose(out2, ref2, atol=5e-2, rtol=5e-2), \
        f"bf16 max abs diff {jnp.max(jnp.abs(out2 - ref2))}"

    print("KERNEL_OK")
</pallas_src>

<mosaic_0001>
module attributes {stable_mosaic.version = 11 : i64} {
  func.func @_mlp_kernel(%arg0: i32, %arg1: memref<16x129xf32, #tpu.memory_space<vmem>>, %arg2: memref<128x256xf32, #tpu.memory_space<vmem>>, %arg3: memref<1x256xf32, #tpu.memory_space<vmem>>, %arg4: memref<1x256xf32, #tpu.memory_space<vmem>>, %arg5: memref<256x512xf32, #tpu.memory_space<vmem>>, %arg6: memref<1x512xf32, #tpu.memory_space<vmem>>, %arg7: memref<512x256xf32, #tpu.memory_space<vmem>>, %arg8: memref<1x256xf32, #tpu.memory_space<vmem>>, %arg9: memref<256x128xf32, #tpu.memory_space<vmem>>, %arg10: memref<1x128xf32, #tpu.memory_space<vmem>>, %arg11: memref<16x128xf32, #tpu.memory_space<vmem>>) attributes {dimension_semantics = [#tpu.dimension_semantics<parallel>], iteration_bounds = array<i64: 1>, scalar_prefetch = 0 : i64, scratch_operands = 0 : i64, tpu.core_type = #tpu.core_type<tc>, window_params = [{transform_indices = @transform_0, window_bounds = array<i64: 16, 129>}, {pipeline_mode = #tpu.pipeline_mode<synchronous>, transform_indices = @transform_1, window_bounds = array<i64: 128, 256>}, {pipeline_mode = #tpu.pipeline_mode<synchronous>, transform_indices = @transform_2, window_bounds = array<i64: 1, 256>}, {pipeline_mode = #tpu.pipeline_mode<synchronous>, transform_indices = @transform_3, window_bounds = array<i64: 1, 256>}, {pipeline_mode = #tpu.pipeline_mode<synchronous>, transform_indices = @transform_4, window_bounds = array<i64: 256, 512>}, {pipeline_mode = #tpu.pipeline_mode<synchronous>, transform_indices = @transform_5, window_bounds = array<i64: 1, 512>}, {pipeline_mode = #tpu.pipeline_mode<synchronous>, transform_indices = @transform_6, window_bounds = array<i64: 512, 256>}, {pipeline_mode = #tpu.pipeline_mode<synchronous>, transform_indices = @transform_7, window_bounds = array<i64: 1, 256>}, {pipeline_mode = #tpu.pipeline_mode<synchronous>, transform_indices = @transform_8, window_bounds = array<i64: 256, 128>}, {pipeline_mode = #tpu.pipeline_mode<synchronous>, transform_indices = @transform_9, window_bounds = array<i64: 1, 128>}, {transform_indices = @transform_10, window_bounds = array<i64: 16, 128>}]} {
    %c0 = arith.constant 0 : index
    %c0_0 = arith.constant 0 : index
    %0 = vector.load %arg4[%c0, %c0_0] : memref<1x256xf32, #tpu.memory_space<vmem>>, vector<1x256xf32>
    %c0_1 = arith.constant 0 : index
    %c0_2 = arith.constant 0 : index
    %1 = vector.load %arg6[%c0_1, %c0_2] : memref<1x512xf32, #tpu.memory_space<vmem>>, vector<1x512xf32>
    %c0_3 = arith.constant 0 : index
    %c0_4 = arith.constant 0 : index
    %2 = vector.load %arg8[%c0_3, %c0_4] : memref<1x256xf32, #tpu.memory_space<vmem>>, vector<1x256xf32>
    %c0_5 = arith.constant 0 : index
    %c0_6 = arith.constant 0 : index
    %3 = vector.load %arg10[%c0_5, %c0_6] : memref<1x128xf32, #tpu.memory_space<vmem>>, vector<1x128xf32>
    %c0_7 = arith.constant 0 : index
    %c0_8 = arith.constant 0 : index
    %4 = vector.load %arg1[%c0_7, %c0_8] : memref<16x129xf32, #tpu.memory_space<vmem>>, vector<16x129xf32>
    %5 = vector.extract_strided_slice %4 {offsets = [0, 0], sizes = [16, 128], strides = [1, 1]} : vector<16x129xf32> to vector<16x128xf32>
    %6 = vector.extract_strided_slice %4 {offsets = [0, 128], sizes = [16, 1], strides = [1, 1]} : vector<16x129xf32> to vector<16x1xf32>
    %c0_9 = arith.constant 0 : index
    %c0_10 = arith.constant 0 : index
    %7 = vector.load %arg2[%c0_9, %c0_10] : memref<128x256xf32, #tpu.memory_space<vmem>>, vector<128x256xf32>
    %cst = arith.constant dense<0.000000e+00> : vector<16x256xf32>
    %8 = tpu.matmul %5, %7, %cst {dimension_numbers = #tpu.dot_dimension_numbers<[1], [0], [0], [1], [0, 0, 1, 1], [], []>} : vector<16x128xf32>, vector<128x256xf32>, vector<16x256xf32> -> vector<16x256xf32>
    %c0_11 = arith.constant 0 : index
    %c0_12 = arith.constant 0 : index
    %9 = vector.load %arg3[%c0_11, %c0_12] : memref<1x256xf32, #tpu.memory_space<vmem>>, vector<1x256xf32>
    %10 = vector.broadcast %6 : vector<16x1xf32> to vector<16x256xf32>
    %11 = vector.broadcast %9 : vector<1x256xf32> to vector<16x256xf32>
    %12 = arith.mulf %10, %11 : vector<16x256xf32>
    %13 = arith.addf %8, %12 : vector<16x256xf32>
    %14 = vector.broadcast %0 : vector<1x256xf32> to vector<16x256xf32>
    %15 = arith.addf %13, %14 : vector<16x256xf32>
    %cst_13 = arith.constant 0.000000e+00 : f32
    %16 = vector.broadcast %cst_13 : f32 to vector<16x256xf32>
    %17 = arith.maximumf %15, %16 : vector<16x256xf32>
    %c0_14 = arith.constant 0 : index
    %c0_15 = arith.constant 0 : index
    %18 = vector.load %arg5[%c0_14, %c0_15] : memref<256x512xf32, #tpu.memory_space<vmem>>, vector<256x512xf32>
    %cst_16 = arith.constant dense<0.000000e+00> : vector<16x512xf32>
    %19 = tpu.matmul %17, %18, %cst_16 {dimension_numbers = #tpu.dot_dimension_numbers<[1], [0], [0], [1], [0, 0, 1, 1], [], []>} : vector<16x256xf32>, vector<256x512xf32>, vector<16x512xf32> -> vector<16x512xf32>
    %20 = vector.broadcast %1 : vector<1x512xf32> to vector<16x512xf32>
    %21 = arith.addf %19, %20 : vector<16x512xf32>
    %cst_17 = arith.constant 0.000000e+00 : f32
    %22 = vector.broadcast %cst_17 : f32 to vector<16x512xf32>
    %23 = arith.maximumf %21, %22 : vector<16x512xf32>
    %c0_18 = arith.constant 0 : index
    %c0_19 = arith.constant 0 : index
    %24 = vector.load %arg7[%c0_18, %c0_19] : memref<512x256xf32, #tpu.memory_space<vmem>>, vector<512x256xf32>
    %cst_20 = arith.constant dense<0.000000e+00> : vector<16x256xf32>
    %25 = tpu.matmul %23, %24, %cst_20 {dimension_numbers = #tpu.dot_dimension_numbers<[1], [0], [0], [1], [0, 0, 1, 1], [], []>} : vector<16x512xf32>, vector<512x256xf32>, vector<16x256xf32> -> vector<16x256xf32>
    %26 = vector.broadcast %2 : vector<1x256xf32> to vector<16x256xf32>
    %27 = arith.addf %25, %26 : vector<16x256xf32>
    %cst_21 = arith.constant 0.000000e+00 : f32
    %28 = vector.broadcast %cst_21 : f32 to vector<16x256xf32>
    %29 = arith.maximumf %27, %28 : vector<16x256xf32>
    %c0_22 = arith.constant 0 : index
    %c0_23 = arith.constant 0 : index
    %30 = vector.load %arg9[%c0_22, %c0_23] : memref<256x128xf32, #tpu.memory_space<vmem>>, vector<256x128xf32>
    %cst_24 = arith.constant dense<0.000000e+00> : vector<16x128xf32>
    %31 = tpu.matmul %29, %30, %cst_24 {dimension_numbers = #tpu.dot_dimension_numbers<[1], [0], [0], [1], [0, 0, 1, 1], [], []>} : vector<16x256xf32>, vector<256x128xf32>, vector<16x128xf32> -> vector<16x128xf32>
    %32 = vector.broadcast %3 : vector<1x128xf32> to vector<16x128xf32>
    %33 = arith.addf %31, %32 : vector<16x128xf32>
    %c0_25 = arith.constant 0 : index
    %c0_26 = arith.constant 0 : index
    %34 = vector.load %arg11[%c0_25, %c0_26] : memref<16x128xf32, #tpu.memory_space<vmem>>, vector<16x128xf32>
    tpu.vector_store %arg11[%c0_25, %c0_26], %33 {strides = array<i32>} : memref<16x128xf32, #tpu.memory_space<vmem>>, vector<16x128xf32>,
    return
  }
  func.func @transform_0(%arg0: i32) -> (i32, i32) {
    %c0_i32 = arith.constant 0 : i32
    %c0_i32_0 = arith.constant 0 : i32
    return %arg0, %c0_i32 : i32, i32
  }
  func.func @transform_1(%arg0: i32) -> (i32, i32) {
    %c0_i32 = arith.constant 0 : i32
    %c0_i32_0 = arith.constant 0 : i32
    %c0_i32_1 = arith.constant 0 : i32
    return %c0_i32, %c0_i32_0 : i32, i32
  }
  func.func @transform_2(%arg0: i32) -> (i32, i32) {
    %c0_i32 = arith.constant 0 : i32
    %c0_i32_0 = arith.constant 0 : i32
    %c0_i32_1 = arith.constant 0 : i32
    return %c0_i32, %c0_i32_0 : i32, i32
  }
  func.func @transform_3(%arg0: i32) -> (i32, i32) {
    %c0_i32 = arith.constant 0 : i32
    %c0_i32_0 = arith.constant 0 : i32
    %c0_i32_1 = arith.constant 0 : i32
    return %c0_i32, %c0_i32_0 : i32, i32
  }
  func.func @transform_4(%arg0: i32) -> (i32, i32) {
    %c0_i32 = arith.constant 0 : i32
    %c0_i32_0 = arith.constant 0 : i32
    %c0_i32_1 = arith.constant 0 : i32
    return %c0_i32, %c0_i32_0 : i32, i32
  }
  func.func @transform_5(%arg0: i32) -> (i32, i32) {
    %c0_i32 = arith.constant 0 : i32
    %c0_i32_0 = arith.constant 0 : i32
    %c0_i32_1 = arith.constant 0 : i32
    return %c0_i32, %c0_i32_0 : i32, i32
  }
  func.func @transform_6(%arg0: i32) -> (i32, i32) {
    %c0_i32 = arith.constant 0 : i32
    %c0_i32_0 = arith.constant 0 : i32
    %c0_i32_1 = arith.constant 0 : i32
    return %c0_i32, %c0_i32_0 : i32, i32
  }
  func.func @transform_7(%arg0: i32) -> (i32, i32) {
    %c0_i32 = arith.constant 0 : i32
    %c0_i32_0 = arith.constant 0 : i32
    %c0_i32_1 = arith.constant 0 : i32
    return %c0_i32, %c0_i32_0 : i32, i32
  }
  func.func @transform_8(%arg0: i32) -> (i32, i32) {
    %c0_i32 = arith.constant 0 : i32
    %c0_i32_0 = arith.constant 0 : i32
    %c0_i32_1 = arith.constant 0 : i32
    return %c0_i32, %c0_i32_0 : i32, i32
  }
  func.func @transform_9(%arg0: i32) -> (i32, i32) {
    %c0_i32 = arith.constant 0 : i32
    %c0_i32_0 = arith.constant 0 : i32
    %c0_i32_1 = arith.constant 0 : i32
    return %c0_i32, %c0_i32_0 : i32, i32
  }
  func.func @transform_10(%arg0: i32) -> (i32, i32) {
    %c0_i32 = arith.constant 0 : i32
    %c0_i32_0 = arith.constant 0 : i32
    return %arg0, %c0_i32 : i32, i32
  }
}

</mosaic_0001>

<llo_original>
// kernel: tpu_custom_call.1
$region0: #{tpu_custom_call.1}
  #allocation0 [shape = 'u32[]', space=smem, size = 0x4, offset = 0x4, fixed_abs, tag = 'smem constant byte address 0x4 - core index']
  #allocation1 [shape = 'u32[144,128]{1,0:T(1,128)}', space=vmem, size = 0x12000, scoped, tag = 'internal scratch']
  %s0 = inlined_call_operand.hbm [shape: f32[16,129], index: 0, kind: input, shape index: {}]
  %s1 = inlined_call_operand.hbm [shape: f32[128,256], index: 1, kind: input, shape index: {}]
  %s2 = inlined_call_operand.vmem [shape: f32[1,256], index: 2, kind: input, shape index: {}]
  %s3 = inlined_call_operand.hbm [shape: f32[1,256], index: 3, kind: input, shape index: {}]
  %s4 = inlined_call_operand.hbm [shape: f32[256,512], index: 4, kind: input, shape index: {}]
  %s5 = inlined_call_operand.vmem [shape: f32[1,512], index: 5, kind: input, shape index: {}]
  %s6 = inlined_call_operand.hbm [shape: f32[512,256], index: 6, kind: input, shape index: {}]
  %s7 = inlined_call_operand.vmem [shape: f32[1,256], index: 7, kind: input, shape index: {}]
  %s8 = inlined_call_operand.hbm [shape: f32[256,128], index: 8, kind: input, shape index: {}]
  %s9 = inlined_call_operand.vmem [shape: f32[1,128], index: 9, kind: input, shape index: {}]
  %s10 = inlined_call_operand.hbm [shape: f32[16,128], index: 10, kind: output, shape index: {}]
  %s11 = sld [smem:[#allocation0]]
  $region74: #{tpu_custom_call.1} parent=0
    _
  %s13 = ssub.s32 1, %s11
  %s14 = scalar_select 0, %s13, %s11
  $region1: #{tpu_custom_call.1} parent=0
    #allocation2 [shape = 'u8[16384]{0}', space=vmem, size = 0x4000, scoped, tag = 'input window, operand 0, single buffered']
    #allocation3 [shape = 's32[1]{0}', space=sflag, size = 0x4, scoped, tag = 'scoped memory for tpu_custom_call.1']
    #allocation4 [shape = 's32[1]{0}', space=sflag, size = 0x4, scoped, tag = 'scoped memory for tpu_custom_call.1']
    #allocation5 [shape = 'u8[131072]{0}', space=vmem, size = 0x20000, scoped, tag = 'input window, operand 1, single buffered']
    #allocation6 [shape = 's32[1]{0}', space=sflag, size = 0x4, scoped, tag = 'scoped memory for tpu_custom_call.1']
    #allocation7 [shape = 'u8[1024]{0}', space=vmem, size = 0x400, scoped, tag = 'input window, operand 3, single buffered']
    #allocation8 [shape = 'u8[524288]{0}', space=vmem, size = 0x80000, scoped, tag = 'input window, operand 4, single buffered']
    #allocation9 [shape = 's32[1]{0}', space=sflag, size = 0x4, scoped, tag = 'scoped memory for tpu_custom_call.1']
    #allocation10 [shape = 'u8[524288]{0}', space=vmem, size = 0x80000, scoped, tag = 'input window, operand 6, single buffered']
    #allocation11 [shape = 'u8[131072]{0}', space=vmem, size = 0x20000, scoped, tag = 'input window, operand 8, single buffered']
    #allocation12 [shape = 's32[1]{0}', space=sflag, size = 0x4, scoped, tag = 'scoped memory for tpu_custom_call.1']
    #allocation13 [shape = 'u8[8192]{0}', space=vmem, size = 0x2000, scoped, tag = 'output window, operand 0, single buffered']
    %15 = vsyncpa [#allocation3], 0
    %16 = vsyncpa [#allocation6], 0
    %17 = vsyncpa [#allocation9], 0
    %18 = vsyncpa [#allocation12], 0
    %19 = vsyncpa [#allocation4], 0
    // Predicated region
    $region2: #{tpu_custom_call.1} parent=1 // pred_check
      _
    $region3: #{tpu_custom_call.1} parent=1 // pred_check_branch
      %21 = sbr.rel (0) target = $region5
    $region4: #{tpu_custom_call.1} parent=1 // pred_region
      %s23 = ssub.s32 512, 512
      %24 = vsyncadd [#allocation3], %s23
      %s25 = sshll.u32 [#allocation2], 4
      %s26 = int_to_ptr.vmem [resolvable:$true] %s25
      %31 = dma.hbm_to_vmem [thread:$0]  %s0, 512, %s26, [#allocation3], 256, 256, 16
    $region5: #{tpu_custom_call.1} parent=1 // pred_fallthru
      _
    // Predicated region
    $region6: #{tpu_custom_call.1} parent=1 // pred_check
      _
    $region7: #{tpu_custom_call.1} parent=1 // pred_check_branch
      %33 = sbr.rel (0) target = $region9
    $region8: #{tpu_custom_call.1} parent=1 // pred_region
      %s35 = ssub.s32 4096, 4096
      %36 = vsyncadd [#allocation6], %s35
      %s37 = sshll.u32 [#allocation5], 4
      %s38 = int_to_ptr.vmem [resolvable:$true] %s37
      %43 = dma.hbm_to_vmem [thread:$0]  %s1, 4096, %s38, [#allocation6], 256, 256, 16
    $region9: #{tpu_custom_call.1} parent=1 // pred_fallthru
      _
    // Predicated region
    $region10: #{tpu_custom_call.1} parent=1 // pred_check
      _
    $region11: #{tpu_custom_call.1} parent=1 // pred_check_branch
      %45 = sbr.rel (0) target = $region13
    $region12: #{tpu_custom_call.1} parent=1 // pred_region
      _
    $region13: #{tpu_custom_call.1} parent=1 // pred_fallthru
      _
    // Predicated region
    $region14: #{tpu_custom_call.1} parent=1 // pred_check
      _
    $region15: #{tpu_custom_call.1} parent=1 // pred_check_branch
      %47 = sbr.rel (0) target = $region17
    $region16: #{tpu_custom_call.1} parent=1 // pred_region
      %s49 = ssub.s32 32, 32
      %50 = vsyncadd [#allocation6], %s49
      %s52 = sshll.u32 [#allocation7], 4
      %s53 = int_to_ptr.vmem [resolvable:$true] %s52
      %55 = dma.hbm_to_vmem [thread:$0]  %s3, 32, %s53, [#allocation6]
    $region17: #{tpu_custom_call.1} parent=1 // pred_fallthru
      _
    // Predicated region
    $region18: #{tpu_custom_call.1} parent=1 // pred_check
      _
    $region19: #{tpu_custom_call.1} parent=1 // pred_check_branch
      %57 = sbr.rel (0) target = $region21
    $region20: #{tpu_custom_call.1} parent=1 // pred_region
      %s59 = ssub.s32 16384, 16384
      %60 = vsyncadd [#allocation9], %s59
      %s61 = sshll.u32 [#allocation8], 4
      %s62 = int_to_ptr.vmem [resolvable:$true] %s61
      %67 = dma.hbm_to_vmem [thread:$0]  %s4, 16384, %s62, [#allocation9], 512, 512, 32
    $region21: #{tpu_custom_call.1} parent=1 // pred_fallthru
      _
    // Predicated region
    $region22: #{tpu_custom_call.1} parent=1 // pred_check
      _
    $region23: #{tpu_custom_call.1} parent=1 // pred_check_branch
      %69 = sbr.rel (0) target = $region25
    $region24: #{tpu_custom_call.1} parent=1 // pred_region
      _
    $region25: #{tpu_custom_call.1} parent=1 // pred_fallthru
      _
    // Predicated region
    $region26: #{tpu_custom_call.1} parent=1 // pred_check
      _
    $region27: #{tpu_custom_call.1} parent=1 // pred_check_branch
      %71 = sbr.rel (0) target = $region29
    $region28: #{tpu_custom_call.1} parent=1 // pred_region
      %s73 = ssub.s32 16384, 16384
      %74 = vsyncadd [#allocation9], %s73
      %s75 = sshll.u32 [#allocation10], 4
      %s76 = int_to_ptr.vmem [resolvable:$true] %s75
      %81 = dma.hbm_to_vmem [thread:$0]  %s6, 16384, %s76, [#allocation9], 256, 256, 16
    $region29: #{tpu_custom_call.1} parent=1 // pred_fallthru
      _
    // Predicated region
    $region30: #{tpu_custom_call.1} parent=1 // pred_check
      _
    $region31: #{tpu_custom_call.1} parent=1 // pred_check_branch
      %83 = sbr.rel (0) target = $region33
    $region32: #{tpu_custom_call.1} parent=1 // pred_region
      _
    $region33: #{tpu_custom_call.1} parent=1 // pred_fallthru
      _
    // Predicated region
    $region34: #{tpu_custom_call.1} parent=1 // pred_check
      _
    $region35: #{tpu_custom_call.1} parent=1 // pred_check_branch
      %85 = sbr.rel (0) target = $region37
    $region36: #{tpu_custom_call.1} parent=1 // pred_region
      %s87 = ssub.s32 4096, 4096
      %88 = vsyncadd [#allocation12], %s87
      %s89 = sshll.u32 [#allocation11], 4
      %s90 = int_to_ptr.vmem [resolvable:$true] %s89
      %95 = dma.hbm_to_vmem [thread:$0]  %s8, 4096, %s90, [#allocation12], 128, 128, 8
    $region37: #{tpu_custom_call.1} parent=1 // pred_fallthru
      _
    // Predicated region
    $region38: #{tpu_custom_call.1} parent=1 // pred_check
      _
    $region39: #{tpu_custom_call.1} parent=1 // pred_check_branch
      %97 = sbr.rel (0) target = $region41
    $region40: #{tpu_custom_call.1} parent=1 // pred_region
      _
    $region41: #{tpu_custom_call.1} parent=1 // pred_fallthru
      _
    // Predicated region
    $region42: #{tpu_custom_call.1} parent=1 // pred_check
      _
    $region43: #{tpu_custom_call.1} parent=1 // pred_check_branch
      %99 = sbr.rel (0) target = $region45
    $region44: #{tpu_custom_call.1} parent=1 // pred_region
      %100 = dma.done [#allocation3], 512
    $region45: #{tpu_custom_call.1} parent=1 // pred_fallthru
      _
    // Predicated region
    $region46: #{tpu_custom_call.1} parent=1 // pred_check
      _
    $region47: #{tpu_custom_call.1} parent=1 // pred_check_branch
      %102 = sbr.rel (0) target = $region49
    $region48: #{tpu_custom_call.1} parent=1 // pred_region
      %103 = dma.done [#allocation6], 4096
    $region49: #{tpu_custom_call.1} parent=1 // pred_fallthru
      _
    // Predicated region
    $region50: #{tpu_custom_call.1} parent=1 // pred_check
      _
    $region51: #{tpu_custom_call.1} parent=1 // pred_check_branch
      %105 = sbr.rel (0) target = $region53
    $region52: #{tpu_custom_call.1} parent=1 // pred_region
      %106 = dma.done [#allocation6], 32
    $region53: #{tpu_custom_call.1} parent=1 // pred_fallthru
      _
    // Predicated region
    $region54: #{tpu_custom_call.1} parent=1 // pred_check
      _
    $region55: #{tpu_custom_call.1} parent=1 // pred_check_branch
      %108 = sbr.rel (0) target = $region57
    $region56: #{tpu_custom_call.1} parent=1 // pred_region
      %109 = dma.done [#allocation9], 16384
    $region57: #{tpu_custom_call.1} parent=1 // pred_fallthru
      _
    // Predicated region
    $region58: #{tpu_custom_call.1} parent=1 // pred_check
      _
    $region59: #{tpu_custom_call.1} parent=1 // pred_check_branch
      %111 = sbr.rel (0) target = $region61
    $region60: #{tpu_custom_call.1} parent=1 // pred_region
      %112 = dma.done [#allocation9], 16384
    $region61: #{tpu_custom_call.1} parent=1 // pred_fallthru
      _
    // Predicated region
    $region62: #{tpu_custom_call.1} parent=1 // pred_check
      _
    $region63: #{tpu_custom_call.1} parent=1 // pred_check_branch
      %114 = sbr.rel (0) target = $region65
    $region64: #{tpu_custom_call.1} parent=1 // pred_region
      %115 = dma.done [#allocation12], 4096
    $region65: #{tpu_custom_call.1} parent=1 // pred_fallthru
      _
    %v116 = vld [vmem:[#allocation7] sm:$0x3]
    %v117 = vld [vmem:[%s5] sm:$0xf]
    %v118 = vld [vmem:[%s7] sm:$0x3]
    %v119 = vld [vmem:[%s9] sm:$0x1]
    %v120 = vld [vmem:[#allocation2] sm:$0xff]
    %v121 = vld [vmem:[#allocation2 + $0x8] sm:$0xff]
    %v122 = vld [vmem:[#allocation2 + $0x10] sm:$0xff]
    %v123 = vld [vmem:[#allocation2 + $0x18] sm:$0xff]
    %v124 = vld [vmem:[#allocation5] sm:$0xff]
    %v125 = vld [vmem:[#allocation5 + $0x8] sm:$0xff]
    %v126 = vld [vmem:[#allocation5 + $0x10] sm:$0xff]
    %v127 = vld [vmem:[#allocation5 + $0x18] sm:$0xff]
    %v128 = vld [vmem:[#allocation5 + $0x20] sm:$0xff]
    %v129 = vld [vmem:[#allocation5 + $0x28] sm:$0xff]
    %v130 = vld [vmem:[#allocation5 + $0x30] sm:$0xff]
    %v131 = vld [vmem:[#allocation5 + $0x38] sm:$0xff]
    %v132 = vld [vmem:[#allocation5 + $0x40] sm:$0xff]
    %v133 = vld [vmem:[#allocation5 + $0x48] sm:$0xff]
    %v134 = vld [vmem:[#allocation5 + $0x50] sm:$0xff]
    %v135 = vld [vmem:[#allocation5 + $0x58] sm:$0xff]
    %v136 = vld [vmem:[#allocation5 + $0x60] sm:$0xff]
    %v137 = vld [vmem:[#allocation5 + $0x68] sm:$0xff]
    %v138 = vld [vmem:[#allocation5 + $0x70] sm:$0xff]
    %v139 = vld [vmem:[#allocation5 + $0x78] sm:$0xff]
    %v140 = vld [vmem:[#allocation5 + $0x80] sm:$0xff]
    %v141 = vld [vmem:[#allocation5 + $0x88] sm:$0xff]
    %v142 = vld [vmem:[#allocation5 + $0x90] sm:$0xff]
    %v143 = vld [vmem:[#allocation5 + $0x98] sm:$0xff]
    %v144 = vld [vmem:[#allocation5 + $0xa0] sm:$0xff]
    %v145 = vld [vmem:[#allocation5 + $0xa8] sm:$0xff]
    %v146 = vld [vmem:[#allocation5 + $0xb0] sm:$0xff]
    %v147 = vld [vmem:[#allocation5 + $0xb8] sm:$0xff]
    %v148 = vld [vmem:[#allocation5 + $0xc0] sm:$0xff]
    %v149 = vld [vmem:[#allocation5 + $0xc8] sm:$0xff]
    %v150 = vld [vmem:[#allocation5 + $0xd0] sm:$0xff]
    %v151 = vld [vmem:[#allocation5 + $0xd8] sm:$0xff]
    %v152 = vld [vmem:[#allocation5 + $0xe0] sm:$0xff]
    %v153 = vld [vmem:[#allocation5 + $0xe8] sm:$0xff]
    %v154 = vld [vmem:[#allocation5 + $0xf0] sm:$0xff]
    %v155 = vld [vmem:[#allocation5 + $0xf8] sm:$0xff]
    %v156 = vld [vmem:[%s2] sm:$0x3]
    %158 = vset.pattern.permute.xlu0 0
    %159 = vperm.xlu0 %158, %v121
    %v160 = vpop.permute.xlu0 %159
    %163 = vset.pattern.permute.xlu0 0
    %164 = vperm.xlu0 %163, %v123
    %v165 = vpop.permute.xlu0 %164
    %v168 = vlaneseq
    %v169 = vshrl.u32 %v168, 7
    %v170 = vsub.s32 0, %v169
    %v171 = vrot.slane %v156, %v170
    %v172 = vlaneseq
    %v173 = vshrl.u32 %v172, 7
    %v174 = vsub.s32 1, %v173
    %v175 = vrot.slane %v156, %v174
    %v178 = vmul.f32 %v160, %v171
    %v179 = vmul.f32 %v160, %v175
    %v180 = vmul.f32 %v165, %v171
    %v181 = vmul.f32 %v165, %v175
    %182 = vmatprep.subr.mxu0 %v155
    %183 = vmatpush1.msra.mxu0 %v154
    %184 = vmatprep.subr.mxu0 %v153
    %185 = vmatpush1.msra.mxu0 %v152
    %186 = vmatprep.subr.mxu0 %v151
    %187 = vmatpush1.msra.mxu0 %v150
    %188 = vmatprep.subr.mxu0 %v149
    %189 = vmatpush1.msra.mxu0 %v148
    %190 = vmatprep.subr.mxu0 %v147
    %191 = vmatpush1.msra.mxu0 %v146
    %192 = vmatprep.subr.mxu0 %v145
    %193 = vmatpush1.msra.mxu0 %v144
    %194 = vmatprep.subr.mxu0 %v143
    %195 = vmatpush1.msra.mxu0 %v142
    %196 = vmatprep.subr.mxu0 %v141
    %197 = vmatpush1.msra.mxu0 %v140
    %198 = vmatprep.subr.mxu0 %v139
    %199 = vmatpush1.msra.mxu0 %v138
    %200 = vmatprep.subr.mxu0 %v137
    %201 = vmatpush1.msra.mxu0 %v136
    %202 = vmatprep.subr.mxu0 %v135
    %203 = vmatpush1.msra.mxu0 %v134
    %204 = vmatprep.subr.mxu0 %v133
    %205 = vmatpush1.msra.mxu0 %v132
    %206 = vmatprep.subr.mxu0 %v131
    %207 = vmatpush1.msra.mxu0 %v130
    %208 = vmatprep.subr.mxu0 %v129
    %209 = vmatpush1.msra.mxu0 %v128
    %210 = vmatprep.subr.mxu0 %v127
    %211 = vmatpush1.msra.mxu0 %v126
    %212 = vmatprep.subr.mxu0 %v125
    %213 = vmatpush1.msra.mxu0 %v124
    %214 = vmatprep.subr.mxu0 0.0
    %215 = vmatpush2.msra.mxu0 0.0
    %216 = vmatprep.subr.mxu0 0.0
    %217 = vmatpush2.msra.mxu0 0.0
    %218 = vmatprep.subr.mxu0 0.0
    %219 = vmatpush2.msra.mxu0 0.0
    %220 = vmatprep.subr.mxu0 0.0
    %221 = vmatpush2.msra.mxu0 0.0
    %222 = vmatprep.subr.mxu0 0.0
    %223 = vmatpush2.msra.mxu0 0.0
    %224 = vmatprep.subr.mxu0 0.0
    %225 = vmatpush2.msra.mxu0 0.0
    %226 = vmatprep.subr.mxu0 0.0
    %227 = vmatpush2.msra.mxu0 0.0
    %228 = vmatprep.subr.mxu0 0.0
    %229 = vmatpush2.msra.mxu0 0.0
    %230 = vmatprep.subr.mxu0 0.0
    %231 = vmatpush2.msra.mxu0 0.0
    %232 = vmatprep.subr.mxu0 0.0
    %233 = vmatpush2.msra.mxu0 0.0
    %234 = vmatprep.subr.mxu0 0.0
    %235 = vmatpush2.msra.mxu0 0.0
    %236 = vmatprep.subr.mxu0 0.0
    %237 = vmatpush2.msra.mxu0 0.0
    %238 = vmatprep.subr.mxu0 0.0
    %239 = vmatpush2.msra.mxu0 0.0
    %240 = vmatprep.subr.mxu0 0.0
    %241 = vmatpush2.msra.mxu0 0.0
    %242 = vmatprep.subr.mxu0 0.0
    %243 = vmatpush2.msra.mxu0 0.0
    %244 = vmatprep.subr.mxu0 0.0
    %245 = vmatpush2.msra.mxu0 0.0
    %246 = vmatprep.mubr.f32.mxu0 0.0
    %247 = vmatmul.mubr.f32.gmra.mxu0 %v120
    %v248 = vpop.f32.mrf.mxu0
    %v249 = vadd.f32 %v178, %v248
    %v250 = vpop.f32.mrf.mxu0
    %v251 = vadd.f32 %v179, %v250
    %252 = vmatprep.mubr.f32.mxu0 0.0
    %253 = vmatmul.mubr.f32.gmra.mxu0 %v122
    %v254 = vpop.f32.mrf.mxu0
    %v255 = vadd.f32 %v180, %v254
    %v256 = vpop.f32.mrf.mxu0
    %v257 = vadd.f32 %v181, %v256
    %258 = vdwg.mxu0
    %v260 = vlaneseq
    %v261 = vshrl.u32 %v260, 7
    %v262 = vsub.s32 0, %v261
    %v263 = vrot.slane %v116, %v262
    %v264 = vlaneseq
    %v265 = vshrl.u32 %v264, 7
    %v266 = vsub.s32 1, %v265
    %v267 = vrot.slane %v116, %v266
    %v270 = vadd.f32 %v249, %v263
    %v271 = vadd.f32 %v251, %v267
    %v272 = vadd.f32 %v255, %v263
    %v273 = vadd.f32 %v257, %v267
    %v274 = vmax.f32 %v270, 0.0
    %v275 = vmax.f32 %v271, 0.0
    %v276 = vmax.f32 %v272, 0.0
    %v277 = vmax.f32 %v273, 0.0
    %v278 = vld [vmem:[#allocation8] sm:$0xff]
    %v279 = vld [vmem:[#allocation8 + $0x8] sm:$0xff]
    %v280 = vld [vmem:[#allocation8 + $0x10] sm:$0xff]
    %v281 = vld [vmem:[#allocation8 + $0x18] sm:$0xff]
    %v282 = vld [vmem:[#allocation8 + $0x20] sm:$0xff]
    %v283 = vld [vmem:[#allocation8 + $0x28] sm:$0xff]
    %v284 = vld [vmem:[#allocation8 + $0x30] sm:$0xff]
    %v285 = vld [vmem:[#allocation8 + $0x38] sm:$0xff]
    %v286 = vld [vmem:[#allocation8 + $0x40] sm:$0xff]
    %v287 = vld [vmem:[#allocation8 + $0x48] sm:$0xff]
    %v288 = vld [vmem:[#allocation8 + $0x50] sm:$0xff]
    %v289 = vld [vmem:[#allocation8 + $0x58] sm:$0xff]
    %v290 = vld [vmem:[#allocation8 + $0x60] sm:$0xff]
    %v291 = vld [vmem:[#allocation8 + $0x68] sm:$0xff]
    %v292 = vld [vmem:[#allocation8 + $0x70] sm:$0xff]
    %v293 = vld [vmem:[#allocation8 + $0x78] sm:$0xff]
    %v294 = vld [vmem:[#allocation8 + $0x80] sm:$0xff]
    %v295 = vld [vmem:[#allocation8 + $0x88] sm:$0xff]
    %v296 = vld [vmem:[#allocation8 + $0x90] sm:$0xff]
    %v297 = vld [vmem:[#allocation8 + $0x98] sm:$0xff]
    %v298 = vld [vmem:[#allocation8 + $0xa0] sm:$0xff]
    %v299 = vld [vmem:[#allocation8 + $0xa8] sm:$0xff]
    %v300 = vld [vmem:[#allocation8 + $0xb0] sm:$0xff]
    %v301 = vld [vmem:[#allocation8 + $0xb8] sm:$0xff]
    %v302 = vld [vmem:[#allocation8 + $0xc0] sm:$0xff]
    %v303 = vld [vmem:[#allocation8 + $0xc8] sm:$0xff]
    %v304 = vld [vmem:[#allocation8 + $0xd0] sm:$0xff]
    %v305 = vld [vmem:[#allocation8 + $0xd8] sm:$0xff]
    %v306 = vld [vmem:[#allocation8 + $0xe0] sm:$0xff]
    %v307 = vld [vmem:[#allocation8 + $0xe8] sm:$0xff]
    %v308 = vld [vmem:[#allocation8 + $0xf0] sm:$0xff]
    %v309 = vld [vmem:[#allocation8 + $0xf8] sm:$0xff]
    %v310 = vld [vmem:[#allocation8 + $0x100] sm:$0xff]
    %v311 = vld [vmem:[#allocation8 + $0x108] sm:$0xff]
    %v312 = vld [vmem:[#allocation8 + $0x110] sm:$0xff]
    %v313 = vld [vmem:[#allocation8 + $0x118] sm:$0xff]
    %v314 = vld [vmem:[#allocation8 + $0x120] sm:$0xff]
    %v315 = vld [vmem:[#allocation8 + $0x128] sm:$0xff]
    %v316 = vld [vmem:[#allocation8 + $0x130] sm:$0xff]
    %v317 = vld [vmem:[#allocation8 + $0x138] sm:$0xff]
    %v318 = vld [vmem:[#allocation8 + $0x140] sm:$0xff]
    %v319 = vld [vmem:[#allocation8 + $0x148] sm:$0xff]
    %v320 = vld [vmem:[#allocation8 + $0x150] sm:$0xff]
    %v321 = vld [vmem:[#allocation8 + $0x158] sm:$0xff]
    %v322 = vld [vmem:[#allocation8 + $0x160] sm:$0xff]
    %v323 = vld [vmem:[#allocation8 + $0x168] sm:$0xff]
    %v324 = vld [vmem:[#allocation8 + $0x170] sm:$0xff]
    %v325 = vld [vmem:[#allocation8 + $0x178] sm:$0xff]
    %v326 = vld [vmem:[#allocation8 + $0x180] sm:$0xff]
    %v327 = vld [vmem:[#allocation8 + $0x188] sm:$0xff]
    %v328 = vld [vmem:[#allocation8 + $0x190] sm:$0xff]
    %v329 = vld [vmem:[#allocation8 + $0x198] sm:$0xff]
    %v330 = vld [vmem:[#allocation8 + $0x1a0] sm:$0xff]
    %v331 = vld [vmem:[#allocation8 + $0x1a8] sm:$0xff]
    %v332 = vld [vmem:[#allocation8 + $0x1b0] sm:$0xff]
    %v333 = vld [vmem:[#allocation8 + $0x1b8] sm:$0xff]
    %v334 = vld [vmem:[#allocation8 + $0x1c0] sm:$0xff]
    %v335 = vld [vmem:[#allocation8 + $0x1c8] sm:$0xff]
    %v336 = vld [vmem:[#allocation8 + $0x1d0] sm:$0xff]
    %v337 = vld [vmem:[#allocation8 + $0x1d8] sm:$0xff]
    %v338 = vld [vmem:[#allocation8 + $0x1e0] sm:$0xff]
    %v339 = vld [vmem:[#allocation8 + $0x1e8] sm:$0xff]
    %v340 = vld [vmem:[#allocation8 + $0x1f0] sm:$0xff]
    %v341 = vld [vmem:[#allocation8 + $0x1f8] sm:$0xff]
    %v342 = vld [vmem:[#allocation8 + $0x200] sm:$0xff]
    %v343 = vld [vmem:[#allocation8 + $0x208] sm:$0xff]
    %v344 = vld [vmem:[#allocation8 + $0x210] sm:$0xff]
    %v345 = vld [vmem:[#allocation8 + $0x218] sm:$0xff]
    %v346 = vld [vmem:[#allocation8 + $0x220] sm:$0xff]
    %v347 = vld [vmem:[#allocation8 + $0x228] sm:$0xff]
    %v348 = vld [vmem:[#allocation8 + $0x230] sm:$0xff]
    %v349 = vld [vmem:[#allocation8 + $0x238] sm:$0xff]
    %v350 = vld [vmem:[#allocation8 + $0x240] sm:$0xff]
    %v351 = vld [vmem:[#allocation8 + $0x248] sm:$0xff]
    %v352 = vld [vmem:[#allocation8 + $0x250] sm:$0xff]
    %v353 = vld [vmem:[#allocation8 + $0x258] sm:$0xff]
    %v354 = vld [vmem:[#allocation8 + $0x260] sm:$0xff]
    %v355 = vld [vmem:[#allocation8 + $0x268] sm:$0xff]
    %v356 = vld [vmem:[#allocation8 + $0x270] sm:$0xff]
    %v357 = vld [vmem:[#allocation8 + $0x278] sm:$0xff]
    %v358 = vld [vmem:[#allocation8 + $0x280] sm:$0xff]
    %v359 = vld [vmem:[#allocation8 + $0x288] sm:$0xff]
    %v360 = vld [vmem:[#allocation8 + $0x290] sm:$0xff]
    %v361 = vld [vmem:[#allocation8 + $0x298] sm:$0xff]
    %v362 = vld [vmem:[#allocation8 + $0x2a0] sm:$0xff]
    %v363 = vld [vmem:[#allocation8 + $0x2a8] sm:$0xff]
    %v364 = vld [vmem:[#allocation8 + $0x2b0] sm:$0xff]
    %v365 = vld [vmem:[#allocation8 + $0x2b8] sm:$0xff]
    %v366 = vld [vmem:[#allocation8 + $0x2c0] sm:$0xff]
    %v367 = vld [vmem:[#allocation8 + $0x2c8] sm:$0xff]
    %v368 = vld [vmem:[#allocation8 + $0x2d0] sm:$0xff]
    %v369 = vld [vmem:[#allocation8 + $0x2d8] sm:$0xff]
    %v370 = vld [vmem:[#allocation8 + $0x2e0] sm:$0xff]
    %v371 = vld [vmem:[#allocation8 + $0x2e8] sm:$0xff]
    %v372 = vld [vmem:[#allocation8 + $0x2f0] sm:$0xff]
    %v373 = vld [vmem:[#allocation8 + $0x2f8] sm:$0xff]
    %v374 = vld [vmem:[#allocation8 + $0x300] sm:$0xff]
    %v375 = vld [vmem:[#allocation8 + $0x308] sm:$0xff]
    %v376 = vld [vmem:[#allocation8 + $0x310] sm:$0xff]
    %v377 = vld [vmem:[#allocation8 + $0x318] sm:$0xff]
    %v378 = vld [vmem:[#allocation8 + $0x320] sm:$0xff]
    %v379 = vld [vmem:[#allocation8 + $0x328] sm:$0xff]
    %v380 = vld [vmem:[#allocation8 + $0x330] sm:$0xff]
    %v381 = vld [vmem:[#allocation8 + $0x338] sm:$0xff]
    %v382 = vld [vmem:[#allocation8 + $0x340] sm:$0xff]
    %v383 = vld [vmem:[#allocation8 + $0x348] sm:$0xff]
    %v384 = vld [vmem:[#allocation8 + $0x350] sm:$0xff]
    %v385 = vld [vmem:[#allocation8 + $0x358] sm:$0xff]
    %v386 = vld [vmem:[#allocation8 + $0x360] sm:$0xff]
    %v387 = vld [vmem:[#allocation8 + $0x368] sm:$0xff]
    %v388 = vld [vmem:[#allocation8 + $0x370] sm:$0xff]
    %v389 = vld [vmem:[#allocation8 + $0x378] sm:$0xff]
    %v390 = vld [vmem:[#allocation8 + $0x380] sm:$0xff]
    %v391 = vld [vmem:[#allocation8 + $0x388] sm:$0xff]
    %v392 = vld [vmem:[#allocation8 + $0x390] sm:$0xff]
    %v393 = vld [vmem:[#allocation8 + $0x398] sm:$0xff]
    %v394 = vld [vmem:[#allocation8 + $0x3a0] sm:$0xff]
    %v395 = vld [vmem:[#allocation8 + $0x3a8] sm:$0xff]
    %v396 = vld [vmem:[#allocation8 + $0x3b0] sm:$0xff]
    %v397 = vld [vmem:[#allocation8 + $0x3b8] sm:$0xff]
    %v398 = vld [vmem:[#allocation8 + $0x3c0] sm:$0xff]
    %v399 = vld [vmem:[#allocation8 + $0x3c8] sm:$0xff]
    %v400 = vld [vmem:[#allocation8 + $0x3d0] sm:$0xff]
    %v401 = vld [vmem:[#allocation8 + $0x3d8] sm:$0xff]
    %v402 = vld [vmem:[#allocation8 + $0x3e0] sm:$0xff]
    %v403 = vld [vmem:[#allocation8 + $0x3e8] sm:$0xff]
    %v404 = vld [vmem:[#allocation8 + $0x3f0] sm:$0xff]
    %v405 = vld [vmem:[#allocation8 + $0x3f8] sm:$0xff]
    %v407 = vlaneseq
    %v408 = vshrl.u32 %v407, 7
    %v409 = vsub.s32 0, %v408
    %v410 = vrot.slane %v117, %v409
    %v411 = vlaneseq
    %v412 = vshrl.u32 %v411, 7
    %v413 = vsub.s32 1, %v412
    %v414 = vrot.slane %v117, %v413
    %v415 = vlaneseq
    %v416 = vshrl.u32 %v415, 7
    %v417 = vsub.s32 2, %v416
    %v418 = vrot.slane %v117, %v417
    %v419 = vlaneseq
    %v420 = vshrl.u32 %v419, 7
    %v421 = vsub.s32 3, %v420
    %v422 = vrot.slane %v117, %v421
    %427 = vmatprep.subr.mxu0 %v339
    %428 = vmatpush1.msra.mxu0 %v338
    %429 = vmatprep.subr.mxu0 %v335
    %430 = vmatpush1.msra.mxu0 %v334
    %431 = vmatprep.subr.mxu0 %v331
    %432 = vmatpush1.msra.mxu0 %v330
    %433 = vmatprep.subr.mxu0 %v327
    %434 = vmatpush1.msra.mxu0 %v326
    %435 = vmatprep.subr.mxu0 %v323
    %436 = vmatpush1.msra.mxu0 %v322
    %437 = vmatprep.subr.mxu0 %v319
    %438 = vmatpush1.msra.mxu0 %v318
    %439 = vmatprep.subr.mxu0 %v315
    %440 = vmatpush1.msra.mxu0 %v314
    %441 = vmatprep.subr.mxu0 %v311
    %442 = vmatpush1.msra.mxu0 %v310
    %443 = vmatprep.subr.mxu0 %v307
    %444 = vmatpush1.msra.mxu0 %v306
    %445 = vmatprep.subr.mxu0 %v303
    %446 = vmatpush1.msra.mxu0 %v302
    %447 = vmatprep.subr.mxu0 %v299
    %448 = vmatpush1.msra.mxu0 %v298
    %449 = vmatprep.subr.mxu0 %v295
    %450 = vmatpush1.msra.mxu0 %v294
    %451 = vmatprep.subr.mxu0 %v291
    %452 = vmatpush1.msra.mxu0 %v290
    %453 = vmatprep.subr.mxu0 %v287
    %454 = vmatpush1.msra.mxu0 %v286
    %455 = vmatprep.subr.mxu0 %v283
    %456 = vmatpush1.msra.mxu0 %v282
    %457 = vmatprep.subr.mxu0 %v279
    %458 = vmatpush1.msra.mxu0 %v278
    %459 = vmatprep.subr.mxu0 %v403
    %460 = vmatpush2.msra.mxu0 %v402
    %461 = vmatprep.subr.mxu0 %v399
    %462 = vmatpush2.msra.mxu0 %v398
    %463 = vmatprep.subr.mxu0 %v395
    %464 = vmatpush2.msra.mxu0 %v394
    %465 = vmatprep.subr.mxu0 %v391
    %466 = vmatpush2.msra.mxu0 %v390
    %467 = vmatprep.subr.mxu0 %v387
    %468 = vmatpush2.msra.mxu0 %v386
    %469 = vmatprep.subr.mxu0 %v383
    %470 = vmatpush2.msra.mxu0 %v382
    %471 = vmatprep.subr.mxu0 %v379
    %472 = vmatpush2.msra.mxu0 %v378
    %473 = vmatprep.subr.mxu0 %v375
    %474 = vmatpush2.msra.mxu0 %v374
    %475 = vmatprep.subr.mxu0 %v371
    %476 = vmatpush2.msra.mxu0 %v370
    %477 = vmatprep.subr.mxu0 %v367
    %478 = vmatpush2.msra.mxu0 %v366
    %479 = vmatprep.subr.mxu0 %v363
    %480 = vmatpush2.msra.mxu0 %v362
    %481 = vmatprep.subr.mxu0 %v359
    %482 = vmatpush2.msra.mxu0 %v358
    %483 = vmatprep.subr.mxu0 %v355
    %484 = vmatpush2.msra.mxu0 %v354
    %485 = vmatprep.subr.mxu0 %v351
    %486 = vmatpush2.msra.mxu0 %v350
    %487 = vmatprep.subr.mxu0 %v347
    %488 = vmatpush2.msra.mxu0 %v346
    %489 = vmatprep.subr.mxu0 %v343
    %490 = vmatpush2.msra.mxu0 %v342
    %491 = vmatprep.mubr.f32.mxu0 %v275
    %492 = vmatmul.mubr.f32.gmra.mxu0 %v274
    %v493 = vpop.f32.mrf.mxu0
    %v494 = vadd.f32 %v410, %v493
    %v495 = vpop.f32.mrf.mxu0
    %v496 = vadd.f32 %v414, %v495
    %497 = vmatprep.mubr.f32.mxu0 %v277
    %498 = vmatmul.mubr.f32.gmra.mxu0 %v276
    %v499 = vpop.f32.mrf.mxu0
    %v500 = vadd.f32 %v410, %v499
    %v501 = vpop.f32.mrf.mxu0
    %v502 = vadd.f32 %v414, %v501
    %503 = vdwg.mxu0
    %504 = vmatprep.subr.mxu0 %v341
    %505 = vmatpush1.msra.mxu0 %v340
    %506 = vmatprep.subr.mxu0 %v337
    %507 = vmatpush1.msra.mxu0 %v336
    %508 = vmatprep.subr.mxu0 %v333
    %509 = vmatpush1.msra.mxu0 %v332
    %510 = vmatprep.subr.mxu0 %v329
    %511 = vmatpush1.msra.mxu0 %v328
    %512 = vmatprep.subr.mxu0 %v325
    %513 = vmatpush1.msra.mxu0 %v324
    %514 = vmatprep.subr.mxu0 %v321
    %515 = vmatpush1.msra.mxu0 %v320
    %516 = vmatprep.subr.mxu0 %v317
    %517 = vmatpush1.msra.mxu0 %v316
    %518 = vmatprep.subr.mxu0 %v313
    %519 = vmatpush1.msra.mxu0 %v312
    %520 = vmatprep.subr.mxu0 %v309
    %521 = vmatpush1.msra.mxu0 %v308
    %522 = vmatprep.subr.mxu0 %v305
    %523 = vmatpush1.msra.mxu0 %v304
    %524 = vmatprep.subr.mxu0 %v301
    %525 = vmatpush1.msra.mxu0 %v300
    %526 = vmatprep.subr.mxu0 %v297
    %527 = vmatpush1.msra.mxu0 %v296
    %528 = vmatprep.subr.mxu0 %v293
    %529 = vmatpush1.msra.mxu0 %v292
    %530 = vmatprep.subr.mxu0 %v289
    %531 = vmatpush1.msra.mxu0 %v288
    %532 = vmatprep.subr.mxu0 %v285
    %533 = vmatpush1.msra.mxu0 %v284
    %534 = vmatprep.subr.mxu0 %v281
    %535 = vmatpush1.msra.mxu0 %v280
    %536 = vmatprep.subr.mxu0 %v405
    %537 = vmatpush2.msra.mxu0 %v404
    %538 = vmatprep.subr.mxu0 %v401
    %539 = vmatpush2.msra.mxu0 %v400
    %540 = vmatprep.subr.mxu0 %v397
    %541 = vmatpush2.msra.mxu0 %v396
    %542 = vmatprep.subr.mxu0 %v393
    %543 = vmatpush2.msra.mxu0 %v392
    %544 = vmatprep.subr.mxu0 %v389
    %545 = vmatpush2.msra.mxu0 %v388
    %546 = vmatprep.subr.mxu0 %v385
    %547 = vmatpush2.msra.mxu0 %v384
    %548 = vmatprep.subr.mxu0 %v381
    %549 = vmatpush2.msra.mxu0 %v380
    %550 = vmatprep.subr.mxu0 %v377
    %551 = vmatpush2.msra.mxu0 %v376
    %552 = vmatprep.subr.mxu0 %v373
    %553 = vmatpush2.msra.mxu0 %v372
    %554 = vmatprep.subr.mxu0 %v369
    %555 = vmatpush2.msra.mxu0 %v368
    %556 = vmatprep.subr.mxu0 %v365
    %557 = vmatpush2.msra.mxu0 %v364
    %558 = vmatprep.subr.mxu0 %v361
    %559 = vmatpush2.msra.mxu0 %v360
    %560 = vmatprep.subr.mxu0 %v357
    %561 = vmatpush2.msra.mxu0 %v356
    %562 = vmatprep.subr.mxu0 %v353
    %563 = vmatpush2.msra.mxu0 %v352
    %564 = vmatprep.subr.mxu0 %v349
    %565 = vmatpush2.msra.mxu0 %v348
    %566 = vmatprep.subr.mxu0 %v345
    %567 = vmatpush2.msra.mxu0 %v344
    %568 = vmatprep.mubr.f32.mxu0 %v275
    %569 = vmatmul.mubr.f32.gmra.mxu0 %v274
    %v570 = vpop.f32.mrf.mxu0
    %v571 = vadd.f32 %v418, %v570
    %v572 = vpop.f32.mrf.mxu0
    %v573 = vadd.f32 %v422, %v572
    %574 = vmatprep.mubr.f32.mxu0 %v277
    %575 = vmatmul.mubr.f32.gmra.mxu0 %v276
    %v576 = vpop.f32.mrf.mxu0
    %v577 = vadd.f32 %v418, %v576
    %v578 = vpop.f32.mrf.mxu0
    %v579 = vadd.f32 %v422, %v578
    %580 = vdwg.mxu0
    %v581 = vmax.f32 %v494, 0.0
    %v582 = vmax.f32 %v496, 0.0
    %v583 = vmax.f32 %v571, 0.0
    %v584 = vmax.f32 %v573, 0.0
    %v585 = vmax.f32 %v500, 0.0
    %v586 = vmax.f32 %v502, 0.0
    %v587 = vmax.f32 %v577, 0.0
    %v588 = vmax.f32 %v579, 0.0
    %v589 = vld [vmem:[#allocation10] sm:$0xff]
    %v590 = vld [vmem:[#allocation10 + $0x8] sm:$0xff]
    %v591 = vld [vmem:[#allocation10 + $0x10] sm:$0xff]
    %v592 = vld [vmem:[#allocation10 + $0x18] sm:$0xff]
    %v593 = vld [vmem:[#allocation10 + $0x20] sm:$0xff]
    %v594 = vld [vmem:[#allocation10 + $0x28] sm:$0xff]
    %v595 = vld [vmem:[#allocation10 + $0x30] sm:$0xff]
    %v596 = vld [vmem:[#allocation10 + $0x38] sm:$0xff]
    %v597 = vld [vmem:[#allocation10 + $0x40] sm:$0xff]
    %v598 = vld [vmem:[#allocation10 + $0x48] sm:$0xff]
    %v599 = vld [vmem:[#allocation10 + $0x50] sm:$0xff]
    %v600 = vld [vmem:[#allocation10 + $0x58] sm:$0xff]
    %v601 = vld [vmem:[#allocation10 + $0x60] sm:$0xff]
    %v602 = vld [vmem:[#allocation10 + $0x68] sm:$0xff]
    %v603 = vld [vmem:[#allocation10 + $0x70] sm:$0xff]
    %v604 = vld [vmem:[#allocation10 + $0x78] sm:$0xff]
    %v605 = vld [vmem:[#allocation10 + $0x80] sm:$0xff]
    %v606 = vld [vmem:[#allocation10 + $0x88] sm:$0xff]
    %v607 = vld [vmem:[#allocation10 + $0x90] sm:$0xff]
    %v608 = vld [vmem:[#allocation10 + $0x98] sm:$0xff]
    %v609 = vld [vmem:[#allocation10 + $0xa0] sm:$0xff]
    %v610 = vld [vmem:[#allocation10 + $0xa8] sm:$0xff]
    %v611 = vld [vmem:[#allocation10 + $0xb0] sm:$0xff]
    %v612 = vld [vmem:[#allocation10 + $0xb8] sm:$0xff]
    %v613 = vld [vmem:[#allocation10 + $0xc0] sm:$0xff]
    %v614 = vld [vmem:[#allocation10 + $0xc8] sm:$0xff]
    %v615 = vld [vmem:[#allocation10 + $0xd0] sm:$0xff]
    %v616 = vld [vmem:[#allocation10 + $0xd8] sm:$0xff]
    %v617 = vld [vmem:[#allocation10 + $0xe0] sm:$0xff]
    %v618 = vld [vmem:[#allocation10 + $0xe8] sm:$0xff]
    %v619 = vld [vmem:[#allocation10 + $0xf0] sm:$0xff]
    %v620 = vld [vmem:[#allocation10 + $0xf8] sm:$0xff]
    %v621 = vld [vmem:[#allocation10 + $0x100] sm:$0xff]
    %v622 = vld [vmem:[#allocation10 + $0x108] sm:$0xff]
    %v623 = vld [vmem:[#allocation10 + $0x110] sm:$0xff]
    %v624 = vld [vmem:[#allocation10 + $0x118] sm:$0xff]
    %v625 = vld [vmem:[#allocation10 + $0x120] sm:$0xff]
    %v626 = vld [vmem:[#allocation10 + $0x128] sm:$0xff]
    %v627 = vld [vmem:[#allocation10 + $0x130] sm:$0xff]
    %v628 = vld [vmem:[#allocation10 + $0x138] sm:$0xff]
    %v629 = vld [vmem:[#allocation10 + $0x140] sm:$0xff]
    %v630 = vld [vmem:[#allocation10 + $0x148] sm:$0xff]
    %v631 = vld [vmem:[#allocation10 + $0x150] sm:$0xff]
    %v632 = vld [vmem:[#allocation10 + $0x158] sm:$0xff]
    %v633 = vld [vmem:[#allocation10 + $0x160] sm:$0xff]
    %v634 = vld [vmem:[#allocation10 + $0x168] sm:$0xff]
    %v635 = vld [vmem:[#allocation10 + $0x170] sm:$0xff]
    %v636 = vld [vmem:[#allocation10 + $0x178] sm:$0xff]
    %v637 = vld [vmem:[#allocation10 + $0x180] sm:$0xff]
    %v638 = vld [vmem:[#allocation10 + $0x188] sm:$0xff]
    %v639 = vld [vmem:[#allocation10 + $0x190] sm:$0xff]
    %v640 = vld [vmem:[#allocation10 + $0x198] sm:$0xff]
    %v641 = vld [vmem:[#allocation10 + $0x1a0] sm:$0xff]
    %v642 = vld [vmem:[#allocation10 + $0x1a8] sm:$0xff]
    %v643 = vld [vmem:[#allocation10 + $0x1b0] sm:$0xff]
    %v644 = vld [vmem:[#allocation10 + $0x1b8] sm:$0xff]
    %v645 = vld [vmem:[#allocation10 + $0x1c0] sm:$0xff]
    %v646 = vld [vmem:[#allocation10 + $0x1c8] sm:$0xff]
    %v647 = vld [vmem:[#allocation10 + $0x1d0] sm:$0xff]
    %v648 = vld [vmem:[#allocation10 + $0x1d8] sm:$0xff]
    %v649 = vld [vmem:[#allocation10 + $0x1e0] sm:$0xff]
    %v650 = vld [vmem:[#allocation10 + $0x1e8] sm:$0xff]
    %v651 = vld [vmem:[#allocation10 + $0x1f0] sm:$0xff]
    %v652 = vld [vmem:[#allocation10 + $0x1f8] sm:$0xff]
    %v653 = vld [vmem:[#allocation10 + $0x200] sm:$0xff]
    %v654 = vld [vmem:[#allocation10 + $0x208] sm:$0xff]
    %v655 = vld [vmem:[#allocation10 + $0x210] sm:$0xff]
    %v656 = vld [vmem:[#allocation10 + $0x218] sm:$0xff]
    %v657 = vld [vmem:[#allocation10 + $0x220] sm:$0xff]
    %v658 = vld [vmem:[#allocation10 + $0x228] sm:$0xff]
    %v659 = vld [vmem:[#allocation10 + $0x230] sm:$0xff]
    %v660 = vld [vmem:[#allocation10 + $0x238] sm:$0xff]
    %v661 = vld [vmem:[#allocation10 + $0x240] sm:$0xff]
    %v662 = vld [vmem:[#allocation10 + $0x248] sm:$0xff]
    %v663 = vld [vmem:[#allocation10 + $0x250] sm:$0xff]
    %v664 = vld [vmem:[#allocation10 + $0x258] sm:$0xff]
    %v665 = vld [vmem:[#allocation10 + $0x260] sm:$0xff]
    %v666 = vld [vmem:[#allocation10 + $0x268] sm:$0xff]
    %v667 = vld [vmem:[#allocation10 + $0x270] sm:$0xff]
    %v668 = vld [vmem:[#allocation10 + $0x278] sm:$0xff]
    %v669 = vld [vmem:[#allocation10 + $0x280] sm:$0xff]
    %v670 = vld [vmem:[#allocation10 + $0x288] sm:$0xff]
    %v671 = vld [vmem:[#allocation10 + $0x290] sm:$0xff]
    %v672 = vld [vmem:[#allocation10 + $0x298] sm:$0xff]
    %v673 = vld [vmem:[#allocation10 + $0x2a0] sm:$0xff]
    %v674 = vld [vmem:[#allocation10 + $0x2a8] sm:$0xff]
    %v675 = vld [vmem:[#allocation10 + $0x2b0] sm:$0xff]
    %v676 = vld [vmem:[#allocation10 + $0x2b8] sm:$0xff]
    %v677 = vld [vmem:[#allocation10 + $0x2c0] sm:$0xff]
    %v678 = vld [vmem:[#allocation10 + $0x2c8] sm:$0xff]
    %v679 = vld [vmem:[#allocation10 + $0x2d0] sm:$0xff]
    %v680 = vld [vmem:[#allocation10 + $0x2d8] sm:$0xff]
    %v681 = vld [vmem:[#allocation10 + $0x2e0] sm:$0xff]
    %v682 = vld [vmem:[#allocation10 + $0x2e8] sm:$0xff]
    %v683 = vld [vmem:[#allocation10 + $0x2f0] sm:$0xff]
    %v684 = vld [vmem:[#allocation10 + $0x2f8] sm:$0xff]
    %v685 = vld [vmem:[#allocation10 + $0x300] sm:$0xff]
    %v686 = vld [vmem:[#allocation10 + $0x308] sm:$0xff]
    %v687 = vld [vmem:[#allocation10 + $0x310] sm:$0xff]
    %v688 = vld [vmem:[#allocation10 + $0x318] sm:$0xff]
    %v689 = vld [vmem:[#allocation10 + $0x320] sm:$0xff]
    %v690 = vld [vmem:[#allocation10 + $0x328] sm:$0xff]
    %v691 = vld [vmem:[#allocation10 + $0x330] sm:$0xff]
    %v692 = vld [vmem:[#allocation10 + $0x338] sm:$0xff]
    %v693 = vld [vmem:[#allocation10 + $0x340] sm:$0xff]
    %v694 = vld [vmem:[#allocation10 + $0x348] sm:$0xff]
    %v695 = vld [vmem:[#allocation10 + $0x350] sm:$0xff]
    %v696 = vld [vmem:[#allocation10 + $0x358] sm:$0xff]
    %v697 = vld [vmem:[#allocation10 + $0x360] sm:$0xff]
    %v698 = vld [vmem:[#allocation10 + $0x368] sm:$0xff]
    %v699 = vld [vmem:[#allocation10 + $0x370] sm:$0xff]
    %v700 = vld [vmem:[#allocation10 + $0x378] sm:$0xff]
    %v701 = vld [vmem:[#allocation10 + $0x380] sm:$0xff]
    %v702 = vld [vmem:[#allocation10 + $0x388] sm:$0xff]
    %v703 = vld [vmem:[#allocation10 + $0x390] sm:$0xff]
    %v704 = vld [vmem:[#allocation10 + $0x398] sm:$0xff]
    %v705 = vld [vmem:[#allocation10 + $0x3a0] sm:$0xff]
    %v706 = vld [vmem:[#allocation10 + $0x3a8] sm:$0xff]
    %v707 = vld [vmem:[#allocation10 + $0x3b0] sm:$0xff]
    %v708 = vld [vmem:[#allocation10 + $0x3b8] sm:$0xff]
    %v709 = vld [vmem:[#allocation10 + $0x3c0] sm:$0xff]
    %v710 = vld [vmem:[#allocation10 + $0x3c8] sm:$0xff]
    %v711 = vld [vmem:[#allocation10 + $0x3d0] sm:$0xff]
    %v712 = vld [vmem:[#allocation10 + $0x3d8] sm:$0xff]
    %v713 = vld [vmem:[#allocation10 + $0x3e0] sm:$0xff]
    %v714 = vld [vmem:[#allocation10 + $0x3e8] sm:$0xff]
    %v715 = vld [vmem:[#allocation10 + $0x3f0] sm:$0xff]
    %v716 = vld [vmem:[#allocation10 + $0x3f8] sm:$0xff]
    %v718 = vlaneseq
    %v719 = vshrl.u32 %v718, 7
    %v720 = vsub.s32 0, %v719
    %v721 = vrot.slane %v118, %v720
    %v722 = vlaneseq
    %v723 = vshrl.u32 %v722, 7
    %v724 = vsub.s32 1, %v723
    %v725 = vrot.slane %v118, %v724
    %728 = vmatprep.subr.mxu0 %v620
    %729 = vmatpush1.msra.mxu0 %v619
    %730 = vmatprep.subr.mxu0 %v618
    %731 = vmatpush1.msra.mxu0 %v617
    %732 = vmatprep.subr.mxu0 %v616
    %733 = vmatpush1.msra.mxu0 %v615
    %734 = vmatprep.subr.mxu0 %v614
    %735 = vmatpush1.msra.mxu0 %v613
    %736 = vmatprep.subr.mxu0 %v612
    %737 = vmatpush1.msra.mxu0 %v611
    %738 = vmatprep.subr.mxu0 %v610
    %739 = vmatpush1.msra.mxu0 %v609
    %740 = vmatprep.subr.mxu0 %v608
    %741 = vmatpush1.msra.mxu0 %v607
    %742 = vmatprep.subr.mxu0 %v606
    %743 = vmatpush1.msra.mxu0 %v605
    %744 = vmatprep.subr.mxu0 %v604
    %745 = vmatpush1.msra.mxu0 %v603
    %746 = vmatprep.subr.mxu0 %v602
    %747 = vmatpush1.msra.mxu0 %v601
    %748 = vmatprep.subr.mxu0 %v600
    %749 = vmatpush1.msra.mxu0 %v599
    %750 = vmatprep.subr.mxu0 %v598
    %751 = vmatpush1.msra.mxu0 %v597
    %752 = vmatprep.subr.mxu0 %v596
    %753 = vmatpush1.msra.mxu0 %v595
    %754 = vmatprep.subr.mxu0 %v594
    %755 = vmatpush1.msra.mxu0 %v593
    %756 = vmatprep.subr.mxu0 %v592
    %757 = vmatpush1.msra.mxu0 %v591
    %758 = vmatprep.subr.mxu0 %v590
    %759 = vmatpush1.msra.mxu0 %v589
    %760 = vmatprep.subr.mxu0 %v652
    %761 = vmatpush2.msra.mxu0 %v651
    %762 = vmatprep.subr.mxu0 %v650
    %763 = vmatpush2.msra.mxu0 %v649
    %764 = vmatprep.subr.mxu0 %v648
    %765 = vmatpush2.msra.mxu0 %v647
    %766 = vmatprep.subr.mxu0 %v646
    %767 = vmatpush2.msra.mxu0 %v645
    %768 = vmatprep.subr.mxu0 %v644
    %769 = vmatpush2.msra.mxu0 %v643
    %770 = vmatprep.subr.mxu0 %v642
    %771 = vmatpush2.msra.mxu0 %v641
    %772 = vmatprep.subr.mxu0 %v640
    %773 = vmatpush2.msra.mxu0 %v639
    %774 = vmatprep.subr.mxu0 %v638
    %775 = vmatpush2.msra.mxu0 %v637
    %776 = vmatprep.subr.mxu0 %v636
    %777 = vmatpush2.msra.mxu0 %v635
    %778 = vmatprep.subr.mxu0 %v634
    %779 = vmatpush2.msra.mxu0 %v633
    %780 = vmatprep.subr.mxu0 %v632
    %781 = vmatpush2.msra.mxu0 %v631
    %782 = vmatprep.subr.mxu0 %v630
    %783 = vmatpush2.msra.mxu0 %v629
    %784 = vmatprep.subr.mxu0 %v628
    %785 = vmatpush2.msra.mxu0 %v627
    %786 = vmatprep.subr.mxu0 %v626
    %787 = vmatpush2.msra.mxu0 %v625
    %788 = vmatprep.subr.mxu0 %v624
    %789 = vmatpush2.msra.mxu0 %v623
    %790 = vmatprep.subr.mxu0 %v622
    %791 = vmatpush2.msra.mxu0 %v621
    %792 = vmatprep.mubr.f32.mxu0 %v582
    %793 = vmatmul.mubr.f32.gmra.mxu0 %v581
    %v794 = vpop.f32.mrf.mxu0
    %v795 = vadd.f32 %v721, %v794
    %v796 = vpop.f32.mrf.mxu0
    %v797 = vadd.f32 %v725, %v796
    %798 = vmatprep.mubr.f32.mxu0 %v586
    %799 = vmatmul.mubr.f32.gmra.mxu0 %v585
    %v800 = vpop.f32.mrf.mxu0
    %v801 = vadd.f32 %v721, %v800
    %v802 = vpop.f32.mrf.mxu0
    %v803 = vadd.f32 %v725, %v802
    %804 = vdwg.mxu0
    %805 = vmatprep.subr.mxu0 %v684
    %806 = vmatpush1.msra.mxu0 %v683
    %807 = vmatprep.subr.mxu0 %v682
    %808 = vmatpush1.msra.mxu0 %v681
    %809 = vmatprep.subr.mxu0 %v680
    %810 = vmatpush1.msra.mxu0 %v679
    %811 = vmatprep.subr.mxu0 %v678
    %812 = vmatpush1.msra.mxu0 %v677
    %813 = vmatprep.subr.mxu0 %v676
    %814 = vmatpush1.msra.mxu0 %v675
    %815 = vmatprep.subr.mxu0 %v674
    %816 = vmatpush1.msra.mxu0 %v673
    %817 = vmatprep.subr.mxu0 %v672
    %818 = vmatpush1.msra.mxu0 %v671
    %819 = vmatprep.subr.mxu0 %v670
    %820 = vmatpush1.msra.mxu0 %v669
    %821 = vmatprep.subr.mxu0 %v668
    %822 = vmatpush1.msra.mxu0 %v667
    %823 = vmatprep.subr.mxu0 %v666
    %824 = vmatpush1.msra.mxu0 %v665
    %825 = vmatprep.subr.mxu0 %v664
    %826 = vmatpush1.msra.mxu0 %v663
    %827 = vmatprep.subr.mxu0 %v662
    %828 = vmatpush1.msra.mxu0 %v661
    %829 = vmatprep.subr.mxu0 %v660
    %830 = vmatpush1.msra.mxu0 %v659
    %831 = vmatprep.subr.mxu0 %v658
    %832 = vmatpush1.msra.mxu0 %v657
    %833 = vmatprep.subr.mxu0 %v656
    %834 = vmatpush1.msra.mxu0 %v655
    %835 = vmatprep.subr.mxu0 %v654
    %836 = vmatpush1.msra.mxu0 %v653
    %837 = vmatprep.subr.mxu0 %v716
    %838 = vmatpush2.msra.mxu0 %v715
    %839 = vmatprep.subr.mxu0 %v714
    %840 = vmatpush2.msra.mxu0 %v713
    %841 = vmatprep.subr.mxu0 %v712
    %842 = vmatpush2.msra.mxu0 %v711
    %843 = vmatprep.subr.mxu0 %v710
    %844 = vmatpush2.msra.mxu0 %v709
    %845 = vmatprep.subr.mxu0 %v708
    %846 = vmatpush2.msra.mxu0 %v707
    %847 = vmatprep.subr.mxu0 %v706
    %848 = vmatpush2.msra.mxu0 %v705
    %849 = vmatprep.subr.mxu0 %v704
    %850 = vmatpush2.msra.mxu0 %v703
    %851 = vmatprep.subr.mxu0 %v702
    %852 = vmatpush2.msra.mxu0 %v701
    %853 = vmatprep.subr.mxu0 %v700
    %854 = vmatpush2.msra.mxu0 %v699
    %855 = vmatprep.subr.mxu0 %v698
    %856 = vmatpush2.msra.mxu0 %v697
    %857 = vmatprep.subr.mxu0 %v696
    %858 = vmatpush2.msra.mxu0 %v695
    %859 = vmatprep.subr.mxu0 %v694
    %860 = vmatpush2.msra.mxu0 %v693
    %861 = vmatprep.subr.mxu0 %v692
    %862 = vmatpush2.msra.mxu0 %v691
    %863 = vmatprep.subr.mxu0 %v690
    %864 = vmatpush2.msra.mxu0 %v689
    %865 = vmatprep.subr.mxu0 %v688
    %866 = vmatpush2.msra.mxu0 %v687
    %867 = vmatprep.subr.mxu0 %v686
    %868 = vmatpush2.msra.mxu0 %v685
    %869 = vmatprep.mubr.f32.mxu0 %v584
    %870 = vmatmul.mubr.f32.gmra.mxu0 %v583
    %v871 = vpop.f32.mrf.mxu0
    %v872 = vadd.f32 %v795, %v871
    %v873 = vpop.f32.mrf.mxu0
    %v874 = vadd.f32 %v797, %v873
    %875 = vmatprep.mubr.f32.mxu0 %v588
    %876 = vmatmul.mubr.f32.gmra.mxu0 %v587
    %v877 = vpop.f32.mrf.mxu0
    %v878 = vadd.f32 %v801, %v877
    %v879 = vpop.f32.mrf.mxu0
    %v880 = vadd.f32 %v803, %v879
    %881 = vdwg.mxu0
    %v882 = vmax.f32 %v872, 0.0
    %v883 = vmax.f32 %v874, 0.0
    %v884 = vmax.f32 %v878, 0.0
    %v885 = vmax.f32 %v880, 0.0
    %v886 = vld [vmem:[#allocation11] sm:$0xff]
    %v887 = vld [vmem:[#allocation11 + $0x8] sm:$0xff]
    %v888 = vld [vmem:[#allocation11 + $0x10] sm:$0xff]
    %v889 = vld [vmem:[#allocation11 + $0x18] sm:$0xff]
    %v890 = vld [vmem:[#allocation11 + $0x20] sm:$0xff]
    %v891 = vld [vmem:[#allocation11 + $0x28] sm:$0xff]
    %v892 = vld [vmem:[#allocation11 + $0x30] sm:$0xff]
    %v893 = vld [vmem:[#allocation11 + $0x38] sm:$0xff]
    %v894 = vld [vmem:[#allocation11 + $0x40] sm:$0xff]
    %v895 = vld [vmem:[#allocation11 + $0x48] sm:$0xff]
    %v896 = vld [vmem:[#allocation11 + $0x50] sm:$0xff]
    %v897 = vld [vmem:[#allocation11 + $0x58] sm:$0xff]
    %v898 = vld [vmem:[#allocation11 + $0x60] sm:$0xff]
    %v899 = vld [vmem:[#allocation11 + $0x68] sm:$0xff]
    %v900 = vld [vmem:[#allocation11 + $0x70] sm:$0xff]
    %v901 = vld [vmem:[#allocation11 + $0x78] sm:$0xff]
    %v902 = vld [vmem:[#allocation11 + $0x80] sm:$0xff]
    %v903 = vld [vmem:[#allocation11 + $0x88] sm:$0xff]
    %v904 = vld [vmem:[#allocation11 + $0x90] sm:$0xff]
    %v905 = vld [vmem:[#allocation11 + $0x98] sm:$0xff]
    %v906 = vld [vmem:[#allocation11 + $0xa0] sm:$0xff]
    %v907 = vld [vmem:[#allocation11 + $0xa8] sm:$0xff]
    %v908 = vld [vmem:[#allocation11 + $0xb0] sm:$0xff]
    %v909 = vld [vmem:[#allocation11 + $0xb8] sm:$0xff]
    %v910 = vld [vmem:[#allocation11 + $0xc0] sm:$0xff]
    %v911 = vld [vmem:[#allocation11 + $0xc8] sm:$0xff]
    %v912 = vld [vmem:[#allocation11 + $0xd0] sm:$0xff]
    %v913 = vld [vmem:[#allocation11 + $0xd8] sm:$0xff]
    %v914 = vld [vmem:[#allocation11 + $0xe0] sm:$0xff]
    %v915 = vld [vmem:[#allocation11 + $0xe8] sm:$0xff]
    %v916 = vld [vmem:[#allocation11 + $0xf0] sm:$0xff]
    %v917 = vld [vmem:[#allocation11 + $0xf8] sm:$0xff]
    %v919 = vlaneseq
    %v920 = vshrl.u32 %v919, 7
    %v921 = vsub.s32 0, %v920
    %v922 = vrot.slane %v119, %v921
    %924 = vmatprep.subr.mxu0 0.0
    %925 = vmatpush1.msra.mxu0 %v901
    %926 = vmatprep.subr.mxu0 0.0
    %927 = vmatpush1.msra.mxu0 %v900
    %928 = vmatprep.subr.mxu0 0.0
    %929 = vmatpush1.msra.mxu0 %v899
    %930 = vmatprep.subr.mxu0 0.0
    %931 = vmatpush1.msra.mxu0 %v898
    %932 = vmatprep.subr.mxu0 0.0
    %933 = vmatpush1.msra.mxu0 %v897
    %934 = vmatprep.subr.mxu0 0.0
    %935 = vmatpush1.msra.mxu0 %v896
    %936 = vmatprep.subr.mxu0 0.0
    %937 = vmatpush1.msra.mxu0 %v895
    %938 = vmatprep.subr.mxu0 0.0
    %939 = vmatpush1.msra.mxu0 %v894
    %940 = vmatprep.subr.mxu0 0.0
    %941 = vmatpush1.msra.mxu0 %v893
    %942 = vmatprep.subr.mxu0 0.0
    %943 = vmatpush1.msra.mxu0 %v892
    %944 = vmatprep.subr.mxu0 0.0
    %945 = vmatpush1.msra.mxu0 %v891
    %946 = vmatprep.subr.mxu0 0.0
    %947 = vmatpush1.msra.mxu0 %v890
    %948 = vmatprep.subr.mxu0 0.0
    %949 = vmatpush1.msra.mxu0 %v889
    %950 = vmatprep.subr.mxu0 0.0
    %951 = vmatpush1.msra.mxu0 %v888
    %952 = vmatprep.subr.mxu0 0.0
    %953 = vmatpush1.msra.mxu0 %v887
    %954 = vmatprep.subr.mxu0 0.0
    %955 = vmatpush1.msra.mxu0 %v886
    %956 = vmatprep.subr.mxu0 0.0
    %957 = vmatpush2.msra.mxu0 %v917
    %958 = vmatprep.subr.mxu0 0.0
    %959 = vmatpush2.msra.mxu0 %v916
    %960 = vmatprep.subr.mxu0 0.0
    %961 = vmatpush2.msra.mxu0 %v915
    %962 = vmatprep.subr.mxu0 0.0
    %963 = vmatpush2.msra.mxu0 %v914
    %964 = vmatprep.subr.mxu0 0.0
    %965 = vmatpush2.msra.mxu0 %v913
    %966 = vmatprep.subr.mxu0 0.0
    %967 = vmatpush2.msra.mxu0 %v912
    %968 = vmatprep.subr.mxu0 0.0
    %969 = vmatpush2.msra.mxu0 %v911
    %970 = vmatprep.subr.mxu0 0.0
    %971 = vmatpush2.msra.mxu0 %v910
    %972 = vmatprep.subr.mxu0 0.0
    %973 = vmatpush2.msra.mxu0 %v909
    %974 = vmatprep.subr.mxu0 0.0
    %975 = vmatpush2.msra.mxu0 %v908
    %976 = vmatprep.subr.mxu0 0.0
    %977 = vmatpush2.msra.mxu0 %v907
    %978 = vmatprep.subr.mxu0 0.0
    %979 = vmatpush2.msra.mxu0 %v906
    %980 = vmatprep.subr.mxu0 0.0
    %981 = vmatpush2.msra.mxu0 %v905
    %982 = vmatprep.subr.mxu0 0.0
    %983 = vmatpush2.msra.mxu0 %v904
    %984 = vmatprep.subr.mxu0 0.0
    %985 = vmatpush2.msra.mxu0 %v903
    %986 = vmatprep.subr.mxu0 0.0
    %987 = vmatpush2.msra.mxu0 %v902
    %988 = vmatprep.mubr.f32.mxu0 %v883
    %989 = vmatmul.mubr.f32.gmra.mxu0 %v882
    %v990 = vpop.f32.mrf.mxu0
    %v991 = vadd.f32 %v922, %v990
    %v992 = vpop.f32.mrf.mxu0
    %993 = vmatprep.mubr.f32.mxu0 %v885
    %994 = vmatmul.mubr.f32.gmra.mxu0 %v884
    %v995 = vpop.f32.mrf.mxu0
    %v996 = vadd.f32 %v922, %v995
    %v997 = vpop.f32.mrf.mxu0
    %998 = vdwg.mxu0
    %999 = vst [vmem:[#allocation13] sm:$0xff] %v991
    %1000 = vst [vmem:[#allocation13 + $0x8] sm:$0xff] %v996
    // Predicated region
    $region66: #{tpu_custom_call.1} parent=1 // pred_check
      _
    $region67: #{tpu_custom_call.1} parent=1 // pred_check_branch
      %1002 = sbr.rel (0) target = $region69
    $region68: #{tpu_custom_call.1} parent=1 // pred_region
      %s1004 = ssub.s32 256, 256
      %1005 = vsyncadd [#allocation4], %s1004
      %s1006 = sshll.u32 [#allocation13], 4
      %s1007 = int_to_ptr.vmem [resolvable:$true] %s1006
      %1012 = dma.vmem_to_hbm [thread:$0]  %s1007, 256, %s10, [#allocation4], 128, 128, 8
    $region69: #{tpu_custom_call.1} parent=1 // pred_fallthru
      _
    // Predicated region
    $region70: #{tpu_custom_call.1} parent=1 // pred_check
      _
    $region71: #{tpu_custom_call.1} parent=1 // pred_check_branch
      %1014 = sbr.rel (0) target = $region73
    $region72: #{tpu_custom_call.1} parent=1 // pred_region
      %1015 = dma.done [#allocation4], 256
    $region73: #{tpu_custom_call.1} parent=1 // pred_fallthru
      _
    %1016 = vsyncpa [#allocation3], 1
    %1017 = vsyncpa [#allocation6], 1
    %1018 = vsyncpa [#allocation9], 1
    %1019 = vsyncpa [#allocation12], 1
    %1020 = vsyncpa [#allocation4], 1

</llo_original>
